<compile_context>
chip_gen: v7x
topology: tpu7x:2x2x1
jax: 0.10.0
libtpu: 0.0.40
codegen_flags: <defaults>
</compile_context>

<pallas_src>
import functools

import jax
import jax.numpy as jnp
from jax.experimental import pallas as pl
from jax.experimental.pallas import tpu as pltpu


def _phase_geometry(filter_size):
    """Distinct source-pixel shifts used by the 2x-upsample+conv phase decomposition."""
    K = filter_size
    p = (K - 1) // 2
    offs = sorted({(a + k - p) // 2 for a in range(2) for k in range(K)})
    d_lo, d_hi = offs[0], offs[-1]
    nd = d_hi - d_lo + 1                              # distinct shifts per spatial dim
    q_top = (-d_lo + 1) if d_lo < 0 else 0            # zero rows above (covers flat guard)
    q_bot = (d_hi + 1) if d_hi > 0 else 0             # zero rows below
    return p, d_lo, d_hi, nd, q_top, q_bot


@functools.partial(jax.jit, static_argnames=("filter_size",))
def upsample_conv(x_nchw, weight_oihw, bias, filter_size):
    """Forward of UpsampleConv: nearest-2x upsample then Conv2d(pad=(K-1)//2, bias).

    x_nchw      : (N, Cin, H, W)       -- PyTorch NCHW input
    weight_oihw : (Cout, Cin, K, K)    -- PyTorch conv weight layout
    bias        : (Cout,)
    returns     : (N, Cout, 2H, 2W)    -- NCHW, matching PyTorch semantics
    """
    N, Cin, H, W = x_nchw.shape
    Cout = weight_oihw.shape[0]
    K = filter_size
    # Even K changes the PyTorch output spatial size (2H-1); out of scope here.
    assert K % 2 == 1, "upsample_conv: only odd filter_size supported"
    p, d_lo, d_hi, ND, q_top, q_bot = _phase_geometry(K)
    assert -d_lo < W and d_hi < W

    HW = H * W                 # NOTE: if HW % 128 != 0 stores become masked (perf only)
    Hq = H + q_top + q_bot
    L = Hq * W
    taps = [(dr, dc) for dr in range(d_lo, d_hi + 1) for dc in range(d_lo, d_hi + 1)]
    NT = len(taps)             # distinct (dr, dc) shifts (K=3 -> 9)
    CKK = NT * Cin             # matmul contraction dim
    R = 4 * Cout               # output rows: 4 phases x Cout

    # ---- images per grid step: put the batch on the MXU lane axis (target ~1024 lanes)
    NB = max(1, min(N, -(-1024 // HW)))
    T = -(-N // NB)            # number of batch tiles (grid size)
    Np = T * NB
    NBHW = NB * HW

    # ---- single pad: batch padding + vertical zero rows (flat-index guard folded in)
    xs = jnp.pad(x_nchw, ((0, Np - N), (0, 0), (q_top, q_bot), (0, 0)))
    xs = xs.reshape(Np, Cin, L)                       # rows flattened onto the lane axis

    # ---- per-phase effective weights packed as (4*Cout, NT*Cin); columns (tap, cin),
    #      rows phase-major (a, b, cout).  Taps a phase does not use stay zero.
    zero = jnp.zeros((Cout, Cin), weight_oihw.dtype)
    blocks = [[zero for _ in range(NT)] for _ in range(4)]
    for a in range(2):
        for b in range(2):
            ph = a * 2 + b
            for kh in range(K):
                dr = (a + kh - p) // 2
                for kw in range(K):
                    dc = (b + kw - p) // 2
                    ti = (dr - d_lo) * ND + (dc - d_lo)
                    blocks[ph][ti] = blocks[ph][ti] + weight_oihw[:, :, kh, kw]
    w_packed = jnp.concatenate(
        [jnp.concatenate(blocks[ph], axis=1) for ph in range(4)], axis=0)   # (R, CKK)

    b_packed = jnp.tile(bias, 4).reshape(R, 1)        # bias per (phase, cout) row

    # ---- per-dc column-edge masks (emulate horizontal zero padding of the source)
    col = jnp.arange(W)
    mask = jnp.stack(
        [jnp.tile((((col + dc) >= 0) & ((col + dc) < W)).astype(x_nchw.dtype), H)
         for dc in range(d_lo, d_hi + 1)], axis=0)    # (ND, HW)

    out_dtype = x_nchw.dtype

    def kernel(x_ref, w_ref, b_ref, m_ref, o_ref, col_ref):
        # x_ref: (NB, Cin, L)   w_ref: (R, CKK)   b_ref: (R, 1)   m_ref: (ND, HW)
        # o_ref: (1, R, NB*HW)  col_ref: (CKK, NB*HW) VMEM scratch (im2col stack)
        for n in range(NB):                                   # static
            for ti, (dr, dc) in enumerate(taps):              # static, NT distinct shifts
                start = (q_top + dr) * W + dc                 # static flat offset
                chunk = x_ref[n, :, pl.ds(start, HW)]         # (Cin, HW), one load/shift
                if dc != 0:                                   # zero wrapped edge columns
                    chunk = chunk * m_ref[pl.ds(dc - d_lo, 1), :]
                col_ref[pl.ds(ti * Cin, Cin), pl.ds(n * HW, HW)] = chunk
        # One MXU matmul covers all 4 phases, all output channels, all NB images.
        acc = jnp.dot(w_ref[...], col_ref[...], preferred_element_type=jnp.float32)
        o_ref[0] = (acc + b_ref[...].astype(jnp.float32)).astype(o_ref.dtype)

    out_phase = pl.pallas_call(
        kernel,
        out_shape=jax.ShapeDtypeStruct((T, R, NBHW), out_dtype),
        grid=(T,),
        in_specs=[
            pl.BlockSpec((NB, Cin, L), lambda t: (t, 0, 0)),
            pl.BlockSpec((R, CKK), lambda t: (0, 0)),
            pl.BlockSpec((R, 1), lambda t: (0, 0)),
            pl.BlockSpec((ND, HW), lambda t: (0, 0)),
        ],
        out_specs=pl.BlockSpec((1, R, NBHW), lambda t: (t, 0, 0)),
        scratch_shapes=[pltpu.VMEM((CKK, NBHW), x_nchw.dtype)],
        compiler_params=pltpu.CompilerParams(
            dimension_semantics=("parallel",),
        ),
    )(xs, w_packed, b_packed, mask)

    # ---- interleave the 4 phases back into NCHW (N, Cout, 2H, 2W)
    # out_phase[t, (a*2+b)*Cout+co, n*HW + i*W + j] == y[t*NB+n, co, 2i+a, 2j+b]
    y = out_phase.reshape(T, 2, 2, Cout, NB, H, W)
    y = y.transpose(0, 4, 3, 5, 1, 6, 2).reshape(Np, Cout, 2 * H, 2 * W)
    return y[:N]


def _reference(x_nchw, weight_oihw, bias, filter_size):
    """Pure-JAX reference (nearest-2x upsample + same-padded conv)."""
    p = (filter_size - 1) // 2
    x = jnp.transpose(x_nchw, (0, 2, 3, 1))
    x = jnp.repeat(jnp.repeat(x, 2, axis=1), 2, axis=2)
    w_hwio = jnp.transpose(weight_oihw, (2, 3, 1, 0))
    y = jax.lax.conv_general_dilated(
        x, w_hwio, window_strides=(1, 1), padding=((p, p), (p, p)),
        dimension_numbers=("NHWC", "HWIO", "NHWC"))
    y = y + bias[None, None, None, :]
    return jnp.transpose(y, (0, 3, 1, 2))


if __name__ == "__main__":
    # Module config: UpsampleConv(name, in_ch=4, out_ch=8, filter_size=3, bias=True)
    N, Cin, H, W = 2, 4, 16, 16
    Cout, K = 8, 3

    key = jax.random.PRNGKey(0)
    kx, kw, kb = jax.random.split(key, 3)

    x = jax.random.normal(kx, (N, Cin, H, W), dtype=jnp.float32)

    # kaiming_uniform-style init: bound = sqrt(6 / fan_in), fan_in = Cin*K*K
    fan_in = Cin * K * K
    w_bound = (6.0 / fan_in) ** 0.5
    weight = jax.random.uniform(kw, (Cout, Cin, K, K), dtype=jnp.float32,
                                minval=-w_bound, maxval=w_bound)
    b_bound = 1.0 / (fan_in ** 0.5)
    bias = jax.random.uniform(kb, (Cout,), dtype=jnp.float32,
                              minval=-b_bound, maxval=b_bound)

    out = jax.block_until_ready(upsample_conv(x, weight, bias, K))
    ref = jax.block_until_ready(_reference(x, weight, bias, K))

    assert out.shape == (N, Cout, 2 * H, 2 * W), out.shape
    assert jnp.allclose(out, ref, atol=1e-4, rtol=1e-4), float(
        jnp.max(jnp.abs(out - ref)))

    print("KERNEL_OK")
</pallas_src>

<mosaic_0001>
module attributes {stable_mosaic.version = 11 : i64} {
  func.func @kernel(%arg0: i32, %arg1: memref<2x4x320xf32, #tpu.memory_space<vmem>>, %arg2: memref<32x36xf32, #tpu.memory_space<vmem>>, %arg3: memref<32x1xf32, #tpu.memory_space<vmem>>, %arg4: memref<3x256xf32, #tpu.memory_space<vmem>>, %arg5: memref<1x32x512xf32, #tpu.memory_space<vmem>>, %arg6: memref<36x512xf32, #tpu.memory_space<vmem>>) attributes {dimension_semantics = [#tpu.dimension_semantics<parallel>], iteration_bounds = array<i64: 1>, scalar_prefetch = 0 : i64, scratch_operands = 1 : i64, tpu.core_type = #tpu.core_type<tc>, window_params = [{transform_indices = @transform_0, window_bounds = array<i64: 2, 4, 320>}, {pipeline_mode = #tpu.pipeline_mode<synchronous>, transform_indices = @transform_1, window_bounds = array<i64: 32, 36>}, {pipeline_mode = #tpu.pipeline_mode<synchronous>, transform_indices = @transform_2, window_bounds = array<i64: 32, 1>}, {pipeline_mode = #tpu.pipeline_mode<synchronous>, transform_indices = @transform_3, window_bounds = array<i64: 3, 256>}, {transform_indices = @transform_4, window_bounds = array<i64: 1, 32, 512>}]} {
    %c0 = arith.constant 0 : index
    %c0_0 = arith.constant 0 : index
    %c15 = arith.constant 15 : index
    %0 = vector.load %arg1[%c0, %c0_0, %c15] : memref<2x4x320xf32, #tpu.memory_space<vmem>>, vector<1x4x256xf32>
    %1 = vector.shape_cast %0 : vector<1x4x256xf32> to vector<4x256xf32>
    %c0_1 = arith.constant 0 : index
    %c0_2 = arith.constant 0 : index
    %2 = vector.load %arg4[%c0_1, %c0_2] : memref<3x256xf32, #tpu.memory_space<vmem>>, vector<1x256xf32>
    %3 = vector.broadcast %2 : vector<1x256xf32> to vector<4x256xf32>
    %4 = arith.mulf %1, %3 : vector<4x256xf32>
    %c0_3 = arith.constant 0 : index
    %c0_4 = arith.constant 0 : index
    %5 = vector.load %arg6[%c0_3, %c0_4] : memref<36x512xf32, #tpu.memory_space<vmem>>, vector<4x256xf32>
    tpu.vector_store %arg6[%c0_3, %c0_4], %4 {strides = array<i32>} : memref<36x512xf32, #tpu.memory_space<vmem>>, vector<4x256xf32>,
    %c0_5 = arith.constant 0 : index
    %c0_6 = arith.constant 0 : index
    %c16 = arith.constant 16 : index
    %6 = vector.load %arg1[%c0_5, %c0_6, %c16] : memref<2x4x320xf32, #tpu.memory_space<vmem>>, vector<1x4x256xf32>
    %7 = vector.shape_cast %6 : vector<1x4x256xf32> to vector<4x256xf32>
    %c4 = arith.constant 4 : index
    %c0_7 = arith.constant 0 : index
    %8 = vector.load %arg6[%c4, %c0_7] : memref<36x512xf32, #tpu.memory_space<vmem>>, vector<4x256xf32>
    tpu.vector_store %arg6[%c4, %c0_7], %7 {strides = array<i32>} : memref<36x512xf32, #tpu.memory_space<vmem>>, vector<4x256xf32>,
    %c0_8 = arith.constant 0 : index
    %c0_9 = arith.constant 0 : index
    %c17 = arith.constant 17 : index
    %9 = vector.load %arg1[%c0_8, %c0_9, %c17] : memref<2x4x320xf32, #tpu.memory_space<vmem>>, vector<1x4x256xf32>
    %10 = vector.shape_cast %9 : vector<1x4x256xf32> to vector<4x256xf32>
    %c2 = arith.constant 2 : index
    %c0_10 = arith.constant 0 : index
    %11 = vector.load %arg4[%c2, %c0_10] : memref<3x256xf32, #tpu.memory_space<vmem>>, vector<1x256xf32>
    %12 = vector.broadcast %11 : vector<1x256xf32> to vector<4x256xf32>
    %13 = arith.mulf %10, %12 : vector<4x256xf32>
    %c8 = arith.constant 8 : index
    %c0_11 = arith.constant 0 : index
    %14 = vector.load %arg6[%c8, %c0_11] : memref<36x512xf32, #tpu.memory_space<vmem>>, vector<4x256xf32>
    tpu.vector_store %arg6[%c8, %c0_11], %13 {strides = array<i32>} : memref<36x512xf32, #tpu.memory_space<vmem>>, vector<4x256xf32>,
    %c0_12 = arith.constant 0 : index
    %c0_13 = arith.constant 0 : index
    %c31 = arith.constant 31 : index
    %15 = vector.load %arg1[%c0_12, %c0_13, %c31] : memref<2x4x320xf32, #tpu.memory_space<vmem>>, vector<1x4x256xf32>
    %16 = vector.shape_cast %15 : vector<1x4x256xf32> to vector<4x256xf32>
    %c0_14 = arith.constant 0 : index
    %c0_15 = arith.constant 0 : index
    %17 = vector.load %arg4[%c0_14, %c0_15] : memref<3x256xf32, #tpu.memory_space<vmem>>, vector<1x256xf32>
    %18 = vector.broadcast %17 : vector<1x256xf32> to vector<4x256xf32>
    %19 = arith.mulf %16, %18 : vector<4x256xf32>
    %c12 = arith.constant 12 : index
    %c0_16 = arith.constant 0 : index
    %20 = vector.load %arg6[%c12, %c0_16] : memref<36x512xf32, #tpu.memory_space<vmem>>, vector<4x256xf32>
    tpu.vector_store %arg6[%c12, %c0_16], %19 {strides = array<i32>} : memref<36x512xf32, #tpu.memory_space<vmem>>, vector<4x256xf32>,
    %c0_17 = arith.constant 0 : index
    %c0_18 = arith.constant 0 : index
    %c32 = arith.constant 32 : index
    %21 = vector.load %arg1[%c0_17, %c0_18, %c32] : memref<2x4x320xf32, #tpu.memory_space<vmem>>, vector<1x4x256xf32>
    %22 = vector.shape_cast %21 : vector<1x4x256xf32> to vector<4x256xf32>
    %c16_19 = arith.constant 16 : index
    %c0_20 = arith.constant 0 : index
    %23 = vector.load %arg6[%c16_19, %c0_20] : memref<36x512xf32, #tpu.memory_space<vmem>>, vector<4x256xf32>
    tpu.vector_store %arg6[%c16_19, %c0_20], %22 {strides = array<i32>} : memref<36x512xf32, #tpu.memory_space<vmem>>, vector<4x256xf32>,
    %c0_21 = arith.constant 0 : index
    %c0_22 = arith.constant 0 : index
    %c33 = arith.constant 33 : index
    %24 = vector.load %arg1[%c0_21, %c0_22, %c33] : memref<2x4x320xf32, #tpu.memory_space<vmem>>, vector<1x4x256xf32>
    %25 = vector.shape_cast %24 : vector<1x4x256xf32> to vector<4x256xf32>
    %c2_23 = arith.constant 2 : index
    %c0_24 = arith.constant 0 : index
    %26 = vector.load %arg4[%c2_23, %c0_24] : memref<3x256xf32, #tpu.memory_space<vmem>>, vector<1x256xf32>
    %27 = vector.broadcast %26 : vector<1x256xf32> to vector<4x256xf32>
    %28 = arith.mulf %25, %27 : vector<4x256xf32>
    %c20 = arith.constant 20 : index
    %c0_25 = arith.constant 0 : index
    %29 = vector.load %arg6[%c20, %c0_25] : memref<36x512xf32, #tpu.memory_space<vmem>>, vector<4x256xf32>
    tpu.vector_store %arg6[%c20, %c0_25], %28 {strides = array<i32>} : memref<36x512xf32, #tpu.memory_space<vmem>>, vector<4x256xf32>,
    %c0_26 = arith.constant 0 : index
    %c0_27 = arith.constant 0 : index
    %c47 = arith.constant 47 : index
    %30 = vector.load %arg1[%c0_26, %c0_27, %c47] : memref<2x4x320xf32, #tpu.memory_space<vmem>>, vector<1x4x256xf32>
    %31 = vector.shape_cast %30 : vector<1x4x256xf32> to vector<4x256xf32>
    %c0_28 = arith.constant 0 : index
    %c0_29 = arith.constant 0 : index
    %32 = vector.load %arg4[%c0_28, %c0_29] : memref<3x256xf32, #tpu.memory_space<vmem>>, vector<1x256xf32>
    %33 = vector.broadcast %32 : vector<1x256xf32> to vector<4x256xf32>
    %34 = arith.mulf %31, %33 : vector<4x256xf32>
    %c24 = arith.constant 24 : index
    %c0_30 = arith.constant 0 : index
    %35 = vector.load %arg6[%c24, %c0_30] : memref<36x512xf32, #tpu.memory_space<vmem>>, vector<4x256xf32>
    tpu.vector_store %arg6[%c24, %c0_30], %34 {strides = array<i32>} : memref<36x512xf32, #tpu.memory_space<vmem>>, vector<4x256xf32>,
    %c0_31 = arith.constant 0 : index
    %c0_32 = arith.constant 0 : index
    %c48 = arith.constant 48 : index
    %36 = vector.load %arg1[%c0_31, %c0_32, %c48] : memref<2x4x320xf32, #tpu.memory_space<vmem>>, vector<1x4x256xf32>
    %37 = vector.shape_cast %36 : vector<1x4x256xf32> to vector<4x256xf32>
    %c28 = arith.constant 28 : index
    %c0_33 = arith.constant 0 : index
    %38 = vector.load %arg6[%c28, %c0_33] : memref<36x512xf32, #tpu.memory_space<vmem>>, vector<4x256xf32>
    tpu.vector_store %arg6[%c28, %c0_33], %37 {strides = array<i32>} : memref<36x512xf32, #tpu.memory_space<vmem>>, vector<4x256xf32>,
    %c0_34 = arith.constant 0 : index
    %c0_35 = arith.constant 0 : index
    %c49 = arith.constant 49 : index
    %39 = vector.load %arg1[%c0_34, %c0_35, %c49] : memref<2x4x320xf32, #tpu.memory_space<vmem>>, vector<1x4x256xf32>
    %40 = vector.shape_cast %39 : vector<1x4x256xf32> to vector<4x256xf32>
    %c2_36 = arith.constant 2 : index
    %c0_37 = arith.constant 0 : index
    %41 = vector.load %arg4[%c2_36, %c0_37] : memref<3x256xf32, #tpu.memory_space<vmem>>, vector<1x256xf32>
    %42 = vector.broadcast %41 : vector<1x256xf32> to vector<4x256xf32>
    %43 = arith.mulf %40, %42 : vector<4x256xf32>
    %c32_38 = arith.constant 32 : index
    %c0_39 = arith.constant 0 : index
    %44 = vector.load %arg6[%c32_38, %c0_39] : memref<36x512xf32, #tpu.memory_space<vmem>>, vector<4x256xf32>
    tpu.vector_store %arg6[%c32_38, %c0_39], %43 {strides = array<i32>} : memref<36x512xf32, #tpu.memory_space<vmem>>, vector<4x256xf32>,
    %c1 = arith.constant 1 : index
    %c0_40 = arith.constant 0 : index
    %c15_41 = arith.constant 15 : index
    %45 = vector.load %arg1[%c1, %c0_40, %c15_41] : memref<2x4x320xf32, #tpu.memory_space<vmem>>, vector<1x4x256xf32>
    %46 = vector.shape_cast %45 : vector<1x4x256xf32> to vector<4x256xf32>
    %c0_42 = arith.constant 0 : index
    %c0_43 = arith.constant 0 : index
    %47 = vector.load %arg4[%c0_42, %c0_43] : memref<3x256xf32, #tpu.memory_space<vmem>>, vector<1x256xf32>
    %48 = vector.broadcast %47 : vector<1x256xf32> to vector<4x256xf32>
    %49 = arith.mulf %46, %48 : vector<4x256xf32>
    %c0_44 = arith.constant 0 : index
    %c256 = arith.constant 256 : index
    %50 = vector.load %arg6[%c0_44, %c256] : memref<36x512xf32, #tpu.memory_space<vmem>>, vector<4x256xf32>
    tpu.vector_store %arg6[%c0_44, %c256], %49 {strides = array<i32>} : memref<36x512xf32, #tpu.memory_space<vmem>>, vector<4x256xf32>,
    %c1_45 = arith.constant 1 : index
    %c0_46 = arith.constant 0 : index
    %c16_47 = arith.constant 16 : index
    %51 = vector.load %arg1[%c1_45, %c0_46, %c16_47] : memref<2x4x320xf32, #tpu.memory_space<vmem>>, vector<1x4x256xf32>
    %52 = vector.shape_cast %51 : vector<1x4x256xf32> to vector<4x256xf32>
    %c4_48 = arith.constant 4 : index
    %c256_49 = arith.constant 256 : index
    %53 = vector.load %arg6[%c4_48, %c256_49] : memref<36x512xf32, #tpu.memory_space<vmem>>, vector<4x256xf32>
    tpu.vector_store %arg6[%c4_48, %c256_49], %52 {strides = array<i32>} : memref<36x512xf32, #tpu.memory_space<vmem>>, vector<4x256xf32>,
    %c1_50 = arith.constant 1 : index
    %c0_51 = arith.constant 0 : index
    %c17_52 = arith.constant 17 : index
    %54 = vector.load %arg1[%c1_50, %c0_51, %c17_52] : memref<2x4x320xf32, #tpu.memory_space<vmem>>, vector<1x4x256xf32>
    %55 = vector.shape_cast %54 : vector<1x4x256xf32> to vector<4x256xf32>
    %c2_53 = arith.constant 2 : index
    %c0_54 = arith.constant 0 : index
    %56 = vector.load %arg4[%c2_53, %c0_54] : memref<3x256xf32, #tpu.memory_space<vmem>>, vector<1x256xf32>
    %57 = vector.broadcast %56 : vector<1x256xf32> to vector<4x256xf32>
    %58 = arith.mulf %55, %57 : vector<4x256xf32>
    %c8_55 = arith.constant 8 : index
    %c256_56 = arith.constant 256 : index
    %59 = vector.load %arg6[%c8_55, %c256_56] : memref<36x512xf32, #tpu.memory_space<vmem>>, vector<4x256xf32>
    tpu.vector_store %arg6[%c8_55, %c256_56], %58 {strides = array<i32>} : memref<36x512xf32, #tpu.memory_space<vmem>>, vector<4x256xf32>,
    %c1_57 = arith.constant 1 : index
    %c0_58 = arith.constant 0 : index
    %c31_59 = arith.constant 31 : index
    %60 = vector.load %arg1[%c1_57, %c0_58, %c31_59] : memref<2x4x320xf32, #tpu.memory_space<vmem>>, vector<1x4x256xf32>
    %61 = vector.shape_cast %60 : vector<1x4x256xf32> to vector<4x256xf32>
    %c0_60 = arith.constant 0 : index
    %c0_61 = arith.constant 0 : index
    %62 = vector.load %arg4[%c0_60, %c0_61] : memref<3x256xf32, #tpu.memory_space<vmem>>, vector<1x256xf32>
    %63 = vector.broadcast %62 : vector<1x256xf32> to vector<4x256xf32>
    %64 = arith.mulf %61, %63 : vector<4x256xf32>
    %c12_62 = arith.constant 12 : index
    %c256_63 = arith.constant 256 : index
    %65 = vector.load %arg6[%c12_62, %c256_63] : memref<36x512xf32, #tpu.memory_space<vmem>>, vector<4x256xf32>
    tpu.vector_store %arg6[%c12_62, %c256_63], %64 {strides = array<i32>} : memref<36x512xf32, #tpu.memory_space<vmem>>, vector<4x256xf32>,
    %c1_64 = arith.constant 1 : index
    %c0_65 = arith.constant 0 : index
    %c32_66 = arith.constant 32 : index
    %66 = vector.load %arg1[%c1_64, %c0_65, %c32_66] : memref<2x4x320xf32, #tpu.memory_space<vmem>>, vector<1x4x256xf32>
    %67 = vector.shape_cast %66 : vector<1x4x256xf32> to vector<4x256xf32>
    %c16_67 = arith.constant 16 : index
    %c256_68 = arith.constant 256 : index
    %68 = vector.load %arg6[%c16_67, %c256_68] : memref<36x512xf32, #tpu.memory_space<vmem>>, vector<4x256xf32>
    tpu.vector_store %arg6[%c16_67, %c256_68], %67 {strides = array<i32>} : memref<36x512xf32, #tpu.memory_space<vmem>>, vector<4x256xf32>,
    %c1_69 = arith.constant 1 : index
    %c0_70 = arith.constant 0 : index
    %c33_71 = arith.constant 33 : index
    %69 = vector.load %arg1[%c1_69, %c0_70, %c33_71] : memref<2x4x320xf32, #tpu.memory_space<vmem>>, vector<1x4x256xf32>
    %70 = vector.shape_cast %69 : vector<1x4x256xf32> to vector<4x256xf32>
    %c2_72 = arith.constant 2 : index
    %c0_73 = arith.constant 0 : index
    %71 = vector.load %arg4[%c2_72, %c0_73] : memref<3x256xf32, #tpu.memory_space<vmem>>, vector<1x256xf32>
    %72 = vector.broadcast %71 : vector<1x256xf32> to vector<4x256xf32>
    %73 = arith.mulf %70, %72 : vector<4x256xf32>
    %c20_74 = arith.constant 20 : index
    %c256_75 = arith.constant 256 : index
    %74 = vector.load %arg6[%c20_74, %c256_75] : memref<36x512xf32, #tpu.memory_space<vmem>>, vector<4x256xf32>
    tpu.vector_store %arg6[%c20_74, %c256_75], %73 {strides = array<i32>} : memref<36x512xf32, #tpu.memory_space<vmem>>, vector<4x256xf32>,
    %c1_76 = arith.constant 1 : index
    %c0_77 = arith.constant 0 : index
    %c47_78 = arith.constant 47 : index
    %75 = vector.load %arg1[%c1_76, %c0_77, %c47_78] : memref<2x4x320xf32, #tpu.memory_space<vmem>>, vector<1x4x256xf32>
    %76 = vector.shape_cast %75 : vector<1x4x256xf32> to vector<4x256xf32>
    %c0_79 = arith.constant 0 : index
    %c0_80 = arith.constant 0 : index
    %77 = vector.load %arg4[%c0_79, %c0_80] : memref<3x256xf32, #tpu.memory_space<vmem>>, vector<1x256xf32>
    %78 = vector.broadcast %77 : vector<1x256xf32> to vector<4x256xf32>
    %79 = arith.mulf %76, %78 : vector<4x256xf32>
    %c24_81 = arith.constant 24 : index
    %c256_82 = arith.constant 256 : index
    %80 = vector.load %arg6[%c24_81, %c256_82] : memref<36x512xf32, #tpu.memory_space<vmem>>, vector<4x256xf32>
    tpu.vector_store %arg6[%c24_81, %c256_82], %79 {strides = array<i32>} : memref<36x512xf32, #tpu.memory_space<vmem>>, vector<4x256xf32>,
    %c1_83 = arith.constant 1 : index
    %c0_84 = arith.constant 0 : index
    %c48_85 = arith.constant 48 : index
    %81 = vector.load %arg1[%c1_83, %c0_84, %c48_85] : memref<2x4x320xf32, #tpu.memory_space<vmem>>, vector<1x4x256xf32>
    %82 = vector.shape_cast %81 : vector<1x4x256xf32> to vector<4x256xf32>
    %c28_86 = arith.constant 28 : index
    %c256_87 = arith.constant 256 : index
    %83 = vector.load %arg6[%c28_86, %c256_87] : memref<36x512xf32, #tpu.memory_space<vmem>>, vector<4x256xf32>
    tpu.vector_store %arg6[%c28_86, %c256_87], %82 {strides = array<i32>} : memref<36x512xf32, #tpu.memory_space<vmem>>, vector<4x256xf32>,
    %c1_88 = arith.constant 1 : index
    %c0_89 = arith.constant 0 : index
    %c49_90 = arith.constant 49 : index
    %84 = vector.load %arg1[%c1_88, %c0_89, %c49_90] : memref<2x4x320xf32, #tpu.memory_space<vmem>>, vector<1x4x256xf32>
    %85 = vector.shape_cast %84 : vector<1x4x256xf32> to vector<4x256xf32>
    %c2_91 = arith.constant 2 : index
    %c0_92 = arith.constant 0 : index
    %86 = vector.load %arg4[%c2_91, %c0_92] : memref<3x256xf32, #tpu.memory_space<vmem>>, vector<1x256xf32>
    %87 = vector.broadcast %86 : vector<1x256xf32> to vector<4x256xf32>
    %88 = arith.mulf %85, %87 : vector<4x256xf32>
    %c32_93 = arith.constant 32 : index
    %c256_94 = arith.constant 256 : index
    %89 = vector.load %arg6[%c32_93, %c256_94] : memref<36x512xf32, #tpu.memory_space<vmem>>, vector<4x256xf32>
    tpu.vector_store %arg6[%c32_93, %c256_94], %88 {strides = array<i32>} : memref<36x512xf32, #tpu.memory_space<vmem>>, vector<4x256xf32>,
    %c0_95 = arith.constant 0 : index
    %c0_96 = arith.constant 0 : index
    %90 = vector.load %arg2[%c0_95, %c0_96] : memref<32x36xf32, #tpu.memory_space<vmem>>, vector<32x36xf32>
    %c0_97 = arith.constant 0 : index
    %c0_98 = arith.constant 0 : index
    %91 = vector.load %arg6[%c0_97, %c0_98] : memref<36x512xf32, #tpu.memory_space<vmem>>, vector<36x512xf32>
    %cst = arith.constant dense<0.000000e+00> : vector<32x512xf32>
    %92 = tpu.matmul %90, %91, %cst {dimension_numbers = #tpu.dot_dimension_numbers<[1], [0], [0], [1], [0, 0, 1, 1], [], []>} : vector<32x36xf32>, vector<36x512xf32>, vector<32x512xf32> -> vector<32x512xf32>
    %c0_99 = arith.constant 0 : index
    %c0_100 = arith.constant 0 : index
    %93 = vector.load %arg3[%c0_99, %c0_100] : memref<32x1xf32, #tpu.memory_space<vmem>>, vector<32x1xf32>
    %94 = vector.broadcast %93 : vector<32x1xf32> to vector<32x512xf32>
    %95 = arith.addf %92, %94 : vector<32x512xf32>
    %c0_101 = arith.constant 0 : index
    %c0_102 = arith.constant 0 : index
    %c0_103 = arith.constant 0 : index
    %96 = vector.load %arg5[%c0_101, %c0_102, %c0_103] : memref<1x32x512xf32, #tpu.memory_space<vmem>>, vector<1x32x512xf32>
    %97 = vector.shape_cast %96 : vector<1x32x512xf32> to vector<32x512xf32>
    %98 = vector.shape_cast %95 : vector<32x512xf32> to vector<1x32x512xf32>
    tpu.vector_store %arg5[%c0_101, %c0_102, %c0_103], %98 {strides = array<i32>} : memref<1x32x512xf32, #tpu.memory_space<vmem>>, vector<1x32x512xf32>,
    return
  }
  func.func @transform_0(%arg0: i32) -> (i32, i32, i32) {
    %c0_i32 = arith.constant 0 : i32
    %c0_i32_0 = arith.constant 0 : i32
    %c0_i32_1 = arith.constant 0 : i32
    return %arg0, %c0_i32, %c0_i32_0 : i32, i32, i32
  }
  func.func @transform_1(%arg0: i32) -> (i32, i32) {
    %c0_i32 = arith.constant 0 : i32
    %c0_i32_0 = arith.constant 0 : i32
    %c0_i32_1 = arith.constant 0 : i32
    return %c0_i32, %c0_i32_0 : i32, i32
  }
  func.func @transform_2(%arg0: i32) -> (i32, i32) {
    %c0_i32 = arith.constant 0 : i32
    %c0_i32_0 = arith.constant 0 : i32
    %c0_i32_1 = arith.constant 0 : i32
    return %c0_i32, %c0_i32_0 : i32, i32
  }
  func.func @transform_3(%arg0: i32) -> (i32, i32) {
    %c0_i32 = arith.constant 0 : i32
    %c0_i32_0 = arith.constant 0 : i32
    %c0_i32_1 = arith.constant 0 : i32
    return %c0_i32, %c0_i32_0 : i32, i32
  }
  func.func @transform_4(%arg0: i32) -> (i32, i32, i32) {
    %c0_i32 = arith.constant 0 : i32
    %c0_i32_0 = arith.constant 0 : i32
    %c0_i32_1 = arith.constant 0 : i32
    return %arg0, %c0_i32, %c0_i32_0 : i32, i32, i32
  }
}

</mosaic_0001>

<llo_original>
// kernel: tile.23
$region0: #{tile.23}
  #allocation0 [shape = 's32[1]{0}', space=sflag, size = 0x4, scoped, tag = 'scoped memory for tile.23']
  %s0 = inlined_call_operand.vmem [shape: f32[8], index: 0, kind: input, shape index: {}]
  %s1 = inlined_call_operand.vmem [shape: f32[4,8], index: 1, kind: output, shape index: {}]
  // Predicated region
  $region2: #{tile.23} parent=0 // pred_check
    _
  $region3: #{tile.23} parent=0 // pred_check_branch
    %3 = sbr.rel (0) target = $region5
  $region4: #{tile.23} parent=0 // pred_region
    _
  $region5: #{tile.23} parent=0 // pred_fallthru
    _
  %v4 = vld [vmem:[%s0] ss:$0 sm:$0xff]
  %5 = vst [vmem:[%s1] sm:$0xf] %v4

// kernel: tile.36
$region0: #{tile.36}
  #allocation0 [shape = 's32[1]{0}', space=sflag, size = 0x4, scoped, tag = 'scoped memory for tile.36']
  %s0 = inlined_call_operand.vmem [shape: f32[16], index: 0, kind: input, shape index: {}]
  %s1 = inlined_call_operand.vmem [shape: f32[16,16], index: 1, kind: output, shape index: {}]
  // Predicated region
  $region2: #{tile.36} parent=0 // pred_check
    _
  $region3: #{tile.36} parent=0 // pred_check_branch
    %3 = sbr.rel (0) target = $region5
  $region4: #{tile.36} parent=0 // pred_region
    _
  $region5: #{tile.36} parent=0 // pred_fallthru
    _
  %v4 = vld [vmem:[%s0] ss:$0 sm:$0xff]
  %5 = vst [vmem:[%s1] sm:$0xff] %v4
  %s6 = scalar_lea.vmem %s1, 8
  %7 = vst [vmem:[%s6] sm:$0xff] %v4

// kernel: tile.0
$region0: #{tile.0}
  %s0 = inlined_call_operand.vmem [shape: f32[4,8], index: 0, kind: input, shape index: {}]
  %s1 = inlined_call_operand.vmem [shape: f32[32,1], index: 1, kind: output, shape index: {}]
  $region1: #{tile.0} parent=0
    #allocation0 [shape = 'u8[4096]{0}', space=vmem, size = 0x1000, scoped, tag = 'scoped mem for input reshape']
    %s3 = sshllo.u32 0, 4
    %v4 = vld [vmem:[%s0] sm:%s3]
    %5 = vst [vmem:[#allocation0] sm:%s3] %v4
    %v6 = vld [vmem:[#allocation0] sm:$0xf]
    %vm7 = vcmask 7168
    %8 = vst.msk [vmem:[%s1] ss:$8 sm:$0xf] %vm7, %v6
    %v9 = vld [vmem:[#allocation0] sm:$0xf]
    %10 = vrot.lane.b32.xlu0 %v9, 127
    %v11 = vpop.permute.xlu0 %10
    %vm12 = vcmask 7168
    %s13 = scalar_lea.vmem %s1, 1
    %14 = vst.msk [vmem:[%s13] ss:$8 sm:$0xf] %vm12, %v11
    %v15 = vld [vmem:[#allocation0] sm:$0xf]
    %16 = vrot.lane.b32.xlu0 %v15, 126
    %v17 = vpop.permute.xlu0 %16
    %vm18 = vcmask 7168
    %s19 = scalar_lea.vmem %s1, 2
    %20 = vst.msk [vmem:[%s19] ss:$8 sm:$0xf] %vm18, %v17
    %v21 = vld [vmem:[#allocation0] sm:$0xf]
    %22 = vrot.lane.b32.xlu0 %v21, 125
    %v23 = vpop.permute.xlu0 %22
    %vm24 = vcmask 7168
    %s25 = scalar_lea.vmem %s1, 3
    %26 = vst.msk [vmem:[%s25] ss:$8 sm:$0xf] %vm24, %v23
    %v27 = vld [vmem:[#allocation0] sm:$0xf]
    %28 = vrot.lane.b32.xlu0 %v27, 124
    %v29 = vpop.permute.xlu0 %28
    %vm30 = vcmask 7168
    %s31 = scalar_lea.vmem %s1, 4
    %32 = vst.msk [vmem:[%s31] ss:$8 sm:$0xf] %vm30, %v29
    %v33 = vld [vmem:[#allocation0] sm:$0xf]
    %34 = vrot.lane.b32.xlu0 %v33, 123
    %v35 = vpop.permute.xlu0 %34
    %vm36 = vcmask 7168
    %s37 = scalar_lea.vmem %s1, 5
    %38 = vst.msk [vmem:[%s37] ss:$8 sm:$0xf] %vm36, %v35
    %v39 = vld [vmem:[#allocation0] sm:$0xf]
    %40 = vrot.lane.b32.xlu0 %v39, 122
    %v41 = vpop.permute.xlu0 %40
    %vm42 = vcmask 7168
    %s43 = scalar_lea.vmem %s1, 6
    %44 = vst.msk [vmem:[%s43] ss:$8 sm:$0xf] %vm42, %v41
    %v45 = vld [vmem:[#allocation0] sm:$0xf]
    %46 = vrot.lane.b32.xlu0 %v45, 121
    %v47 = vpop.permute.xlu0 %46
    %vm48 = vcmask 7168
    %s49 = scalar_lea.vmem %s1, 7
    %50 = vst.msk [vmem:[%s49] ss:$8 sm:$0xf] %vm48, %v47

// kernel: tile.39
$region0: #{tile.39}
  %s0 = inlined_call_operand.vmem [shape: f32[16,16], index: 0, kind: input, shape index: {}]
  %s1 = inlined_call_operand.vmem [shape: f32[1,256], index: 1, kind: output, shape index: {}]
  $region1: #{tile.39} parent=0
    #allocation0 [shape = 'u8[8192]{0}', space=vmem, size = 0x2000, scoped, tag = 'scoped mem for output reshape']
    %s2 = smov 3
    %v3 = vld [vmem:[%s0] ss:$8 sm:%s2]
    %vm4 = vcmask 130048
    %5 = vst.msk [vmem:[#allocation0] ss:$8 sm:$0x3] %vm4, %v3
    %s6 = scalar_lea.vmem %s0, 7
    %s7 = smov 3
    %v8 = vld [vmem:[%s6] ss:$8 sm:%s7]
    %9 = vrot.lane.b32.xlu0 %v8, 112
    %v10 = vpop.permute.xlu0 %9
    %vm11 = vcmask 1048448
    %12 = vst.msk [vmem:[#allocation0] ss:$8 sm:$0x3] %vm11, %v10
    %s13 = scalar_lea.vmem %s0, 6
    %s14 = smov 3
    %v15 = vld [vmem:[%s13] ss:$8 sm:%s14]
    %16 = vrot.lane.b32.xlu0 %v15, 96
    %v17 = vpop.permute.xlu0 %16
    %vm18 = vcmask 917248
    %19 = vst.msk [vmem:[#allocation0] ss:$8 sm:$0x3] %vm18, %v17
    %s20 = scalar_lea.vmem %s0, 5
    %s21 = smov 3
    %v22 = vld [vmem:[%s20] ss:$8 sm:%s21]
    %23 = vrot.lane.b32.xlu0 %v22, 80
    %v24 = vpop.permute.xlu0 %23
    %vm25 = vcmask 786048
    %26 = vst.msk [vmem:[#allocation0] ss:$8 sm:$0x3] %vm25, %v24
    %s27 = scalar_lea.vmem %s0, 4
    %s28 = smov 3
    %v29 = vld [vmem:[%s27] ss:$8 sm:%s28]
    %30 = vrot.lane.b32.xlu0 %v29, 64
    %v31 = vpop.permute.xlu0 %30
    %vm32 = vcmask 654848
    %33 = vst.msk [vmem:[#allocation0] ss:$8 sm:$0x3] %vm32, %v31
    %s34 = scalar_lea.vmem %s0, 3
    %s35 = smov 3
    %v36 = vld [vmem:[%s34] ss:$8 sm:%s35]
    %37 = vrot.lane.b32.xlu0 %v36, 48
    %v38 = vpop.permute.xlu0 %37
    %vm39 = vcmask 523648
    %40 = vst.msk [vmem:[#allocation0] ss:$8 sm:$0x3] %vm39, %v38
    %s41 = scalar_lea.vmem %s0, 2
    %s42 = smov 3
    %v43 = vld [vmem:[%s41] ss:$8 sm:%s42]
    %44 = vrot.lane.b32.xlu0 %v43, 32
    %v45 = vpop.permute.xlu0 %44
    %vm46 = vcmask 392448
    %47 = vst.msk [vmem:[#allocation0] ss:$8 sm:$0x3] %vm46, %v45
    %s48 = scalar_lea.vmem %s0, 1
    %s49 = smov 3
    %v50 = vld [vmem:[%s48] ss:$8 sm:%s49]
    %51 = vrot.lane.b32.xlu0 %v50, 16
    %v52 = vpop.permute.xlu0 %51
    %vm53 = vcmask 261248
    %54 = vst.msk [vmem:[#allocation0] ss:$8 sm:$0x3] %vm53, %v52
    %s56 = sshllo.u32 0, 1
    %v58 = vld [vmem:[#allocation0] sm:%s56]
    %s59 = sshllo.u32 0, 1
    %60 = vst [vmem:[%s1] sm:%s59] %v58
    %s61 = scalar_lea.vmem [#allocation0], 8
    %v62 = vld [vmem:[%s61] sm:%s56]
    %s63 = sshllo.u32 0, 1
    %s64 = scalar_lea.vmem %s1, 1
    %65 = vst [vmem:[%s64] sm:%s63] %v62

// kernel: upsample_conv.1
$region0: #{upsample_conv.1}
  #allocation0 [shape = 'u32[]', space=smem, size = 0x4, offset = 0x4, fixed_abs, tag = 'smem constant byte address 0x4 - core index']
  #allocation1 [shape = 'u32[144,128]{1,0:T(1,128)}', space=vmem, size = 0x12000, scoped, tag = 'internal scratch']
  #allocation2 [shape = 'f32[36,512]{1,0:T(8,128)}', space=vmem, size = 0x14000, scoped, tag = 'scratch operand']
  %s0 = inlined_call_operand.vmem [shape: f32[2,4,320], index: 0, kind: input, shape index: {}]
  %s1 = inlined_call_operand.vmem [shape: f32[32,36], index: 1, kind: input, shape index: {}]
  %s2 = inlined_call_operand.vmem [shape: f32[32,1], index: 2, kind: input, shape index: {}]
  %s3 = inlined_call_operand.vmem [shape: f32[3,256], index: 3, kind: input, shape index: {}]
  %s4 = inlined_call_operand.vmem [shape: f32[1,32,512], index: 4, kind: output, shape index: {}]
  %s5 = sld [smem:[#allocation0]]
  $region26: #{upsample_conv.1} parent=0
    _
  %s7 = ssub.s32 1, %s5
  %s8 = scalar_select 0, %s7, %s5
  // Predicated region
  $region2: #{upsample_conv.1} parent=0 // pred_check
    _
  $region3: #{upsample_conv.1} parent=0 // pred_check_branch
    %10 = sbr.rel (0) target = $region5
  $region4: #{upsample_conv.1} parent=0 // pred_region
    _
  $region5: #{upsample_conv.1} parent=0 // pred_fallthru
    _
  // Predicated region
  $region6: #{upsample_conv.1} parent=0 // pred_check
    _
  $region7: #{upsample_conv.1} parent=0 // pred_check_branch
    %12 = sbr.rel (0) target = $region9
  $region8: #{upsample_conv.1} parent=0 // pred_region
    _
  $region9: #{upsample_conv.1} parent=0 // pred_fallthru
    _
  // Predicated region
  $region10: #{upsample_conv.1} parent=0 // pred_check
    _
  $region11: #{upsample_conv.1} parent=0 // pred_check_branch
    %14 = sbr.rel (0) target = $region13
  $region12: #{upsample_conv.1} parent=0 // pred_region
    _
  $region13: #{upsample_conv.1} parent=0 // pred_fallthru
    _
  // Predicated region
  $region14: #{upsample_conv.1} parent=0 // pred_check
    _
  $region15: #{upsample_conv.1} parent=0 // pred_check_branch
    %16 = sbr.rel (0) target = $region17
  $region16: #{upsample_conv.1} parent=0 // pred_region
    _
  $region17: #{upsample_conv.1} parent=0 // pred_fallthru
    _
  %v17 = vld [vmem:[%s0] sm:$0xff]
  %v18 = vld [vmem:[%s0 + $0x8] sm:$0xf]
  %v19 = vld [vmem:[%s3] ss:$4 sm:$0x3]
  %v21 = vlaneseq
  %v22 = vshrl.u32 %v21, 7
  %v23 = vsub.s32 0, %v22
  %v24 = vrot.slane %v19, %v23
  %v25 = vlaneseq
  %v26 = vshrl.u32 %v25, 7
  %v27 = vsub.s32 1, %v26
  %v28 = vrot.slane %v19, %v27
  %v29 = vcombine.low %v24, %v28
  %30 = vrot.lane.b32.xlu0 %v29, 15
  %v31 = vpop.permute.xlu0 %30
  %v32 = vrot.slane %v31, 4
  %vm33 = vcmask 121856
  %v34 = vsel %vm33, %v32, %v31
  %v37 = vmul.f32 %v17, %v34
  %v38 = vmul.f32 %v18, %v32
  %v41 = vcombine.high %v37, %v37
  %42 = vrot.lane.b32.xlu0 %v37, 113
  %v43 = vpop.permute.xlu0 %42
  %44 = vrot.lane.b32.xlu0 %v41, 113
  %v45 = vpop.permute.xlu0 %44
  %46 = vrot.lane.b32.xlu0 %v38, 113
  %v47 = vpop.permute.xlu0 %46
  %vm48 = vcmask 924672
  %v49 = vsel %vm48, %v43, %v45
  %v50 = vsel %vm48, %v45, %v47
  %53 = vst [vmem:[#allocation2] sm:$0xf] %v49
  %54 = vst [vmem:[#allocation2 + $0x8] sm:$0xf] %v50
  %v55 = vld [vmem:[%s0] sm:$0xff]
  %v56 = vld [vmem:[%s0 + $0x8] sm:$0xf]
  %v59 = vcombine.low %v55, %v55
  %v60 = vcombine.low %v56, %v56
  %61 = vrot.lane.b32.xlu0 %v59, 112
  %v62 = vpop.permute.xlu0 %61
  %63 = vrot.lane.b32.xlu0 %v55, 112
  %v64 = vpop.permute.xlu0 %63
  %65 = vrot.lane.b32.xlu0 %v60, 112
  %v66 = vpop.permute.xlu0 %65
  %vm67 = vcmask 916480
  %v68 = vsel %vm67, %v62, %v64
  %v69 = vsel %vm67, %v64, %v66
  %72 = vst [vmem:[#allocation2] sm:$0xf0] %v68
  %73 = vst [vmem:[#allocation2 + $0x8] sm:$0xf0] %v69
  %v74 = vld [vmem:[%s0] sm:$0xff]
  %v75 = vld [vmem:[%s0 + $0x8] sm:$0xf]
  %s76 = scalar_lea.vmem %s3, 2
  %v77 = vld [vmem:[%s76] ss:$4 sm:$0x3]
  %v79 = vlaneseq
  %v80 = vshrl.u32 %v79, 7
  %v81 = vsub.s32 0, %v80
  %v82 = vrot.slane %v77, %v81
  %v83 = vlaneseq
  %v84 = vshrl.u32 %v83, 7
  %v85 = vsub.s32 1, %v84
  %v86 = vrot.slane %v77, %v85
  %v87 = vcombine.low %v82, %v86
  %88 = vrot.lane.b32.xlu0 %v87, 17
  %v89 = vpop.permute.xlu0 %88
  %v90 = vrot.slane %v89, 4
  %vm91 = vcmask 138240
  %v92 = vsel %vm91, %v90, %v89
  %v95 = vmul.f32 %v74, %v92
  %v96 = vmul.f32 %v75, %v90
  %v99 = vcombine.high %v95, %v95
  %100 = vrot.lane.b32.xlu0 %v95, 111
  %v101 = vpop.permute.xlu0 %100
  %102 = vrot.lane.b32.xlu0 %v99, 111
  %v103 = vpop.permute.xlu0 %102
  %104 = vrot.lane.b32.xlu0 %v96, 111
  %v105 = vpop.permute.xlu0 %104
  %vm106 = vcmask 908288
  %v107 = vsel %vm106, %v101, %v103
  %v108 = vsel %vm106, %v103, %v105
  %111 = vst [vmem:[#allocation2 + $0x20] sm:$0xf] %v107
  %112 = vst [vmem:[#allocation2 + $0x28] sm:$0xf] %v108
  %v113 = vld [vmem:[%s0] sm:$0xff]
  %v114 = vld [vmem:[%s0 + $0x8] sm:$0xf]
  %v115 = vld [vmem:[%s3] ss:$4 sm:$0x3]
  %v117 = vlaneseq
  %v118 = vshrl.u32 %v117, 7
  %v119 = vsub.s32 0, %v118
  %v120 = vrot.slane %v115, %v119
  %v121 = vlaneseq
  %v122 = vshrl.u32 %v121, 7
  %v123 = vsub.s32 1, %v122
  %v124 = vrot.slane %v115, %v123
  %v125 = vcombine.low %v120, %v124
  %126 = vrot.lane.b32.xlu0 %v125, 31
  %v127 = vpop.permute.xlu0 %126
  %v128 = vrot.slane %v127, 4
  %vm129 = vcmask 252928
  %v130 = vsel %vm129, %v128, %v127
  %v133 = vmul.f32 %v113, %v130
  %v134 = vmul.f32 %v114, %v128
  %v137 = vcombine.low %v133, %v133
  %v138 = vcombine.low %v134, %v134
  %139 = vrot.lane.b32.xlu0 %v137, 97
  %v140 = vpop.permute.xlu0 %139
  %141 = vrot.lane.b32.xlu0 %v133, 97
  %v142 = vpop.permute.xlu0 %141
  %143 = vrot.lane.b32.xlu0 %v138, 97
  %v144 = vpop.permute.xlu0 %143
  %vm145 = vcmask 793600
  %v146 = vsel %vm145, %v140, %v142
  %v147 = vsel %vm145, %v142, %v144
  %150 = vst [vmem:[#allocation2 + $0x20] sm:$0xf0] %v146
  %151 = vst [vmem:[#allocation2 + $0x28] sm:$0xf0] %v147
  %v152 = vld [vmem:[%s0] sm:$0xff]
  %v153 = vld [vmem:[%s0 + $0x8] sm:$0xf]
  %v156 = vcombine.high %v152, %v152
  %157 = vrot.lane.b32.xlu0 %v152, 96
  %v158 = vpop.permute.xlu0 %157
  %159 = vrot.lane.b32.xlu0 %v156, 96
  %v160 = vpop.permute.xlu0 %159
  %161 = vrot.lane.b32.xlu0 %v153, 96
  %v162 = vpop.permute.xlu0 %161
  %vm163 = vcmask 785408
  %v164 = vsel %vm163, %v158, %v160
  %v165 = vsel %vm163, %v160, %v162
  %168 = vst [vmem:[#allocation2 + $0x40] sm:$0xf] %v164
  %169 = vst [vmem:[#allocation2 + $0x48] sm:$0xf] %v165
  %v170 = vld [vmem:[%s0] sm:$0xff]
  %v171 = vld [vmem:[%s0 + $0x8] sm:$0xf]
  %v172 = vld [vmem:[%s76] ss:$4 sm:$0x3]
  %v174 = vlaneseq
  %v175 = vshrl.u32 %v174, 7
  %v176 = vsub.s32 0, %v175
  %v177 = vrot.slane %v172, %v176
  %v178 = vlaneseq
  %v179 = vshrl.u32 %v178, 7
  %v180 = vsub.s32 1, %v179
  %v181 = vrot.slane %v172, %v180
  %v182 = vcombine.low %v177, %v181
  %183 = vrot.lane.b32.xlu0 %v182, 33
  %v184 = vpop.permute.xlu0 %183
  %v185 = vrot.slane %v184, 4
  %vm186 = vcmask 269312
  %v187 = vsel %vm186, %v185, %v184
  %v190 = vmul.f32 %v170, %v187
  %v191 = vmul.f32 %v171, %v185
  %v194 = vcombine.low %v190, %v190
  %v195 = vcombine.low %v191, %v191
  %196 = vrot.lane.b32.xlu0 %v194, 95
  %v197 = vpop.permute.xlu0 %196
  %198 = vrot.lane.b32.xlu0 %v190, 95
  %v199 = vpop.permute.xlu0 %198
  %200 = vrot.lane.b32.xlu0 %v195, 95
  %v201 = vpop.permute.xlu0 %200
  %vm202 = vcmask 777216
  %v203 = vsel %vm202, %v197, %v199
  %v204 = vsel %vm202, %v199, %v201
  %207 = vst [vmem:[#allocation2 + $0x40] sm:$0xf0] %v203
  %208 = vst [vmem:[#allocation2 + $0x48] sm:$0xf0] %v204
  %v209 = vld [vmem:[%s0] sm:$0xff]
  %v210 = vld [vmem:[%s0 + $0x8] sm:$0xf]
  %v211 = vld [vmem:[%s3] ss:$4 sm:$0x3]
  %v213 = vlaneseq
  %v214 = vshrl.u32 %v213, 7
  %v215 = vsub.s32 0, %v214
  %v216 = vrot.slane %v211, %v215
  %v217 = vlaneseq
  %v218 = vshrl.u32 %v217, 7
  %v219 = vsub.s32 1, %v218
  %v220 = vrot.slane %v211, %v219
  %v221 = vcombine.low %v216, %v220
  %222 = vrot.lane.b32.xlu0 %v221, 47
  %v223 = vpop.permute.xlu0 %222
  %v224 = vrot.slane %v223, 4
  %vm225 = vcmask 384000
  %v226 = vsel %vm225, %v224, %v223
  %v229 = vmul.f32 %v209, %v226
  %v230 = vmul.f32 %v210, %v224
  %v233 = vcombine.high %v229, %v229
  %234 = vrot.lane.b32.xlu0 %v229, 81
  %v235 = vpop.permute.xlu0 %234
  %236 = vrot.lane.b32.xlu0 %v233, 81
  %v237 = vpop.permute.xlu0 %236
  %238 = vrot.lane.b32.xlu0 %v230, 81
  %v239 = vpop.permute.xlu0 %238
  %vm240 = vcmask 662528
  %v241 = vsel %vm240, %v235, %v237
  %v242 = vsel %vm240, %v237, %v239
  %245 = vst [vmem:[#allocation2 + $0x60] sm:$0xf] %v241
  %246 = vst [vmem:[#allocation2 + $0x68] sm:$0xf] %v242
  %v247 = vld [vmem:[%s0] sm:$0xff]
  %v248 = vld [vmem:[%s0 + $0x8] sm:$0xf]
  %v251 = vcombine.low %v247, %v247
  %v252 = vcombine.low %v248, %v248
  %253 = vrot.lane.b32.xlu0 %v251, 80
  %v254 = vpop.permute.xlu0 %253
  %255 = vrot.lane.b32.xlu0 %v247, 80
  %v256 = vpop.permute.xlu0 %255
  %257 = vrot.lane.b32.xlu0 %v252, 80
  %v258 = vpop.permute.xlu0 %257
  %vm259 = vcmask 654336
  %v260 = vsel %vm259, %v254, %v256
  %v261 = vsel %vm259, %v256, %v258
  %264 = vst [vmem:[#allocation2 + $0x60] sm:$0xf0] %v260
  %265 = vst [vmem:[#allocation2 + $0x68] sm:$0xf0] %v261
  %v266 = vld [vmem:[%s0] sm:$0xff]
  %v267 = vld [vmem:[%s0 + $0x8] sm:$0xf]
  %v268 = vld [vmem:[%s76] ss:$4 sm:$0x3]
  %v270 = vlaneseq
  %v271 = vshrl.u32 %v270, 7
  %v272 = vsub.s32 0, %v271
  %v273 = vrot.slane %v268, %v272
  %v274 = vlaneseq
  %v275 = vshrl.u32 %v274, 7
  %v276 = vsub.s32 1, %v275
  %v277 = vrot.slane %v268, %v276
  %v278 = vcombine.low %v273, %v277
  %279 = vrot.lane.b32.xlu0 %v278, 49
  %v280 = vpop.permute.xlu0 %279
  %v281 = vrot.slane %v280, 4
  %vm282 = vcmask 400384
  %v283 = vsel %vm282, %v281, %v280
  %v286 = vmul.f32 %v266, %v283
  %v287 = vmul.f32 %v267, %v281
  %v290 = vcombine.high %v286, %v286
  %291 = vrot.lane.b32.xlu0 %v286, 79
  %v292 = vpop.permute.xlu0 %291
  %293 = vrot.lane.b32.xlu0 %v290, 79
  %v294 = vpop.permute.xlu0 %293
  %295 = vrot.lane.b32.xlu0 %v287, 79
  %v296 = vpop.permute.xlu0 %295
  %vm297 = vcmask 646144
  %v298 = vsel %vm297, %v292, %v294
  %v299 = vsel %vm297, %v294, %v296
  %302 = vst [vmem:[#allocation2 + $0x80] sm:$0xf] %v298
  %303 = vst [vmem:[#allocation2 + $0x88] sm:$0xf] %v299
  %s304 = scalar_lea.vmem %s0, 12
  %v305 = vld [vmem:[%s304] sm:$0xff]
  %v306 = vld [vmem:[%s304 + $0x8] sm:$0xf]
  %v307 = vld [vmem:[%s3] ss:$4 sm:$0x3]
  %v309 = vlaneseq
  %v310 = vshrl.u32 %v309, 7
  %v311 = vsub.s32 0, %v310
  %v312 = vrot.slane %v307, %v311
  %v313 = vlaneseq
  %v314 = vshrl.u32 %v313, 7
  %v315 = vsub.s32 1, %v314
  %v316 = vrot.slane %v307, %v315
  %v317 = vcombine.low %v312, %v316
  %318 = vrot.lane.b32.xlu0 %v317, 15
  %v319 = vpop.permute.xlu0 %318
  %v320 = vrot.slane %v319, 4
  %v321 = vsel %vm33, %v320, %v319
  %v324 = vmul.f32 %v305, %v321
  %v325 = vmul.f32 %v306, %v320
  %v328 = vcombine.high %v324, %v324
  %329 = vrot.lane.b32.xlu0 %v324, 113
  %v330 = vpop.permute.xlu0 %329
  %331 = vrot.lane.b32.xlu0 %v328, 113
  %v332 = vpop.permute.xlu0 %331
  %333 = vrot.lane.b32.xlu0 %v325, 113
  %v334 = vpop.permute.xlu0 %333
  %v335 = vsel %vm48, %v330, %v332
  %v336 = vsel %vm48, %v332, %v334
  %339 = vst [vmem:[#allocation2 + $0x10] sm:$0xf] %v335
  %340 = vst [vmem:[#allocation2 + $0x18] sm:$0xf] %v336
  %v341 = vld [vmem:[%s304] sm:$0xff]
  %v342 = vld [vmem:[%s304 + $0x8] sm:$0xf]
  %v345 = vcombine.low %v341, %v341
  %v346 = vcombine.low %v342, %v342
  %347 = vrot.lane.b32.xlu0 %v345, 112
  %v348 = vpop.permute.xlu0 %347
  %349 = vrot.lane.b32.xlu0 %v341, 112
  %v350 = vpop.permute.xlu0 %349
  %351 = vrot.lane.b32.xlu0 %v346, 112
  %v352 = vpop.permute.xlu0 %351
  %v353 = vsel %vm67, %v348, %v350
  %v354 = vsel %vm67, %v350, %v352
  %357 = vst [vmem:[#allocation2 + $0x10] sm:$0xf0] %v353
  %358 = vst [vmem:[#allocation2 + $0x18] sm:$0xf0] %v354
  %v359 = vld [vmem:[%s304] sm:$0xff]
  %v360 = vld [vmem:[%s304 + $0x8] sm:$0xf]
  %v361 = vld [vmem:[%s76] ss:$4 sm:$0x3]
  %v363 = vlaneseq
  %v364 = vshrl.u32 %v363, 7
  %v365 = vsub.s32 0, %v364
  %v366 = vrot.slane %v361, %v365
  %v367 = vlaneseq
  %v368 = vshrl.u32 %v367, 7
  %v369 = vsub.s32 1, %v368
  %v370 = vrot.slane %v361, %v369
  %v371 = vcombine.low %v366, %v370
  %372 = vrot.lane.b32.xlu0 %v371, 17
  %v373 = vpop.permute.xlu0 %372
  %v374 = vrot.slane %v373, 4
  %v375 = vsel %vm91, %v374, %v373
  %v378 = vmul.f32 %v359, %v375
  %v379 = vmul.f32 %v360, %v374
  %v382 = vcombine.high %v378, %v378
  %383 = vrot.lane.b32.xlu0 %v378, 111
  %v384 = vpop.permute.xlu0 %383
  %385 = vrot.lane.b32.xlu0 %v382, 111
  %v386 = vpop.permute.xlu0 %385
  %387 = vrot.lane.b32.xlu0 %v379, 111
  %v388 = vpop.permute.xlu0 %387
  %v389 = vsel %vm106, %v384, %v386
  %v390 = vsel %vm106, %v386, %v388
  %393 = vst [vmem:[#allocation2 + $0x30] sm:$0xf] %v389
  %394 = vst [vmem:[#allocation2 + $0x38] sm:$0xf] %v390
  %v395 = vld [vmem:[%s304] sm:$0xff]
  %v396 = vld [vmem:[%s304 + $0x8] sm:$0xf]
  %v397 = vld [vmem:[%s3] ss:$4 sm:$0x3]
  %v399 = vlaneseq
  %v400 = vshrl.u32 %v399, 7
  %v401 = vsub.s32 0, %v400
  %v402 = vrot.slane %v397, %v401
  %v403 = vlaneseq
  %v404 = vshrl.u32 %v403, 7
  %v405 = vsub.s32 1, %v404
  %v406 = vrot.slane %v397, %v405
  %v407 = vcombine.low %v402, %v406
  %408 = vrot.lane.b32.xlu0 %v407, 31
  %v409 = vpop.permute.xlu0 %408
  %v410 = vrot.slane %v409, 4
  %v411 = vsel %vm129, %v410, %v409
  %v414 = vmul.f32 %v395, %v411
  %v415 = vmul.f32 %v396, %v410
  %v418 = vcombine.low %v414, %v414
  %v419 = vcombine.low %v415, %v415
  %420 = vrot.lane.b32.xlu0 %v418, 97
  %v421 = vpop.permute.xlu0 %420
  %422 = vrot.lane.b32.xlu0 %v414, 97
  %v423 = vpop.permute.xlu0 %422
  %424 = vrot.lane.b32.xlu0 %v419, 97
  %v425 = vpop.permute.xlu0 %424
  %v426 = vsel %vm145, %v421, %v423
  %v427 = vsel %vm145, %v423, %v425
  %430 = vst [vmem:[#allocation2 + $0x30] sm:$0xf0] %v426
  %431 = vst [vmem:[#allocation2 + $0x38] sm:$0xf0] %v427
  %v432 = vld [vmem:[%s304] sm:$0xff]
  %v433 = vld [vmem:[%s304 + $0x8] sm:$0xf]
  %v436 = vcombine.high %v432, %v432
  %437 = vrot.lane.b32.xlu0 %v432, 96
  %v438 = vpop.permute.xlu0 %437
  %439 = vrot.lane.b32.xlu0 %v436, 96
  %v440 = vpop.permute.xlu0 %439
  %441 = vrot.lane.b32.xlu0 %v433, 96
  %v442 = vpop.permute.xlu0 %441
  %v443 = vsel %vm163, %v438, %v440
  %v444 = vsel %vm163, %v440, %v442
  %447 = vst [vmem:[#allocation2 + $0x50] sm:$0xf] %v443
  %448 = vst [vmem:[#allocation2 + $0x58] sm:$0xf] %v444
  %v449 = vld [vmem:[%s304] sm:$0xff]
  %v450 = vld [vmem:[%s304 + $0x8] sm:$0xf]
  %v451 = vld [vmem:[%s76] ss:$4 sm:$0x3]
  %v453 = vlaneseq
  %v454 = vshrl.u32 %v453, 7
  %v455 = vsub.s32 0, %v454
  %v456 = vrot.slane %v451, %v455
  %v457 = vlaneseq
  %v458 = vshrl.u32 %v457, 7
  %v459 = vsub.s32 1, %v458
  %v460 = vrot.slane %v451, %v459
  %v461 = vcombine.low %v456, %v460
  %462 = vrot.lane.b32.xlu0 %v461, 33
  %v463 = vpop.permute.xlu0 %462
  %v464 = vrot.slane %v463, 4
  %v465 = vsel %vm186, %v464, %v463
  %v468 = vmul.f32 %v449, %v465
  %v469 = vmul.f32 %v450, %v464
  %v472 = vcombine.low %v468, %v468
  %v473 = vcombine.low %v469, %v469
  %474 = vrot.lane.b32.xlu0 %v472, 95
  %v475 = vpop.permute.xlu0 %474
  %476 = vrot.lane.b32.xlu0 %v468, 95
  %v477 = vpop.permute.xlu0 %476
  %478 = vrot.lane.b32.xlu0 %v473, 95
  %v479 = vpop.permute.xlu0 %478
  %v480 = vsel %vm202, %v475, %v477
  %v481 = vsel %vm202, %v477, %v479
  %484 = vst [vmem:[#allocation2 + $0x50] sm:$0xf0] %v480
  %485 = vst [vmem:[#allocation2 + $0x58] sm:$0xf0] %v481
  %v486 = vld [vmem:[%s304] sm:$0xff]
  %v487 = vld [vmem:[%s304 + $0x8] sm:$0xf]
  %v488 = vld [vmem:[%s3] ss:$4 sm:$0x3]
  %v490 = vlaneseq
  %v491 = vshrl.u32 %v490, 7
  %v492 = vsub.s32 0, %v491
  %v493 = vrot.slane %v488, %v492
  %v494 = vlaneseq
  %v495 = vshrl.u32 %v494, 7
  %v496 = vsub.s32 1, %v495
  %v497 = vrot.slane %v488, %v496
  %v498 = vcombine.low %v493, %v497
  %499 = vrot.lane.b32.xlu0 %v498, 47
  %v500 = vpop.permute.xlu0 %499
  %v501 = vrot.slane %v500, 4
  %v502 = vsel %vm225, %v501, %v500
  %v505 = vmul.f32 %v486, %v502
  %v506 = vmul.f32 %v487, %v501
  %v509 = vcombine.high %v505, %v505
  %510 = vrot.lane.b32.xlu0 %v505, 81
  %v511 = vpop.permute.xlu0 %510
  %512 = vrot.lane.b32.xlu0 %v509, 81
  %v513 = vpop.permute.xlu0 %512
  %514 = vrot.lane.b32.xlu0 %v506, 81
  %v515 = vpop.permute.xlu0 %514
  %v516 = vsel %vm240, %v511, %v513
  %v517 = vsel %vm240, %v513, %v515
  %520 = vst [vmem:[#allocation2 + $0x70] sm:$0xf] %v516
  %521 = vst [vmem:[#allocation2 + $0x78] sm:$0xf] %v517
  %v522 = vld [vmem:[%s304] sm:$0xff]
  %v523 = vld [vmem:[%s304 + $0x8] sm:$0xf]
  %v526 = vcombine.low %v522, %v522
  %v527 = vcombine.low %v523, %v523
  %528 = vrot.lane.b32.xlu0 %v526, 80
  %v529 = vpop.permute.xlu0 %528
  %530 = vrot.lane.b32.xlu0 %v522, 80
  %v531 = vpop.permute.xlu0 %530
  %532 = vrot.lane.b32.xlu0 %v527, 80
  %v533 = vpop.permute.xlu0 %532
  %v534 = vsel %vm259, %v529, %v531
  %v535 = vsel %vm259, %v531, %v533
  %538 = vst [vmem:[#allocation2 + $0x70] sm:$0xf0] %v534
  %539 = vst [vmem:[#allocation2 + $0x78] sm:$0xf0] %v535
  %v540 = vld [vmem:[%s304] sm:$0xff]
  %v541 = vld [vmem:[%s304 + $0x8] sm:$0xf]
  %v542 = vld [vmem:[%s76] ss:$4 sm:$0x3]
  %v544 = vlaneseq
  %v545 = vshrl.u32 %v544, 7
  %v546 = vsub.s32 0, %v545
  %v547 = vrot.slane %v542, %v546
  %v548 = vlaneseq
  %v549 = vshrl.u32 %v548, 7
  %v550 = vsub.s32 1, %v549
  %v551 = vrot.slane %v542, %v550
  %v552 = vcombine.low %v547, %v551
  %553 = vrot.lane.b32.xlu0 %v552, 49
  %v554 = vpop.permute.xlu0 %553
  %v555 = vrot.slane %v554, 4
  %v556 = vsel %vm282, %v555, %v554
  %v559 = vmul.f32 %v540, %v556
  %v560 = vmul.f32 %v541, %v555
  %v563 = vcombine.high %v559, %v559
  %564 = vrot.lane.b32.xlu0 %v559, 79
  %v565 = vpop.permute.xlu0 %564
  %566 = vrot.lane.b32.xlu0 %v563, 79
  %v567 = vpop.permute.xlu0 %566
  %568 = vrot.lane.b32.xlu0 %v560, 79
  %v569 = vpop.permute.xlu0 %568
  %v570 = vsel %vm297, %v565, %v567
  %v571 = vsel %vm297, %v567, %v569
  %574 = vst [vmem:[#allocation2 + $0x90] sm:$0xf] %v570
  %575 = vst [vmem:[#allocation2 + $0x98] sm:$0xf] %v571
  %v576 = vld [vmem:[%s1] sm:$0xff]
  %v577 = vld [vmem:[%s1 + $0x8] sm:$0xff]
  %v578 = vld [vmem:[%s1 + $0x10] sm:$0xff]
  %v579 = vld [vmem:[%s1 + $0x18] sm:$0xff]
  %v580 = vld [vmem:[#allocation2] sm:$0xff]
  %v581 = vld [vmem:[#allocation2 + $0x8] sm:$0xff]
  %v582 = vld [vmem:[#allocation2 + $0x10] sm:$0xff]
  %v583 = vld [vmem:[#allocation2 + $0x18] sm:$0xff]
  %v584 = vld [vmem:[#allocation2 + $0x20] sm:$0xff]
  %v585 = vld [vmem:[#allocation2 + $0x28] sm:$0xff]
  %v586 = vld [vmem:[#allocation2 + $0x30] sm:$0xff]
  %v587 = vld [vmem:[#allocation2 + $0x38] sm:$0xff]
  %v588 = vld [vmem:[#allocation2 + $0x40] sm:$0xff]
  %v589 = vld [vmem:[#allocation2 + $0x48] sm:$0xff]
  %v590 = vld [vmem:[#allocation2 + $0x50] sm:$0xff]
  %v591 = vld [vmem:[#allocation2 + $0x58] sm:$0xff]
  %v592 = vld [vmem:[#allocation2 + $0x60] sm:$0xff]
  %v593 = vld [vmem:[#allocation2 + $0x68] sm:$0xff]
  %v594 = vld [vmem:[#allocation2 + $0x70] sm:$0xff]
  %v595 = vld [vmem:[#allocation2 + $0x78] sm:$0xff]
  %v596 = vld [vmem:[#allocation2 + $0x80] sm:$0xf]
  %v597 = vld [vmem:[#allocation2 + $0x88] sm:$0xf]
  %v598 = vld [vmem:[#allocation2 + $0x90] sm:$0xf]
  %v599 = vld [vmem:[#allocation2 + $0x98] sm:$0xf]
  %v600 = vld [vmem:[%s2] sm:$0xff]
  %v601 = vld [vmem:[%s2 + $0x8] sm:$0xff]
  %v602 = vld [vmem:[%s2 + $0x10] sm:$0xff]
  %v603 = vld [vmem:[%s2 + $0x18] sm:$0xff]
  %605 = vset.pattern.permute.xlu0 0
  %606 = vperm.xlu0 %605, %v600
  %v607 = vpop.permute.xlu0 %606
  %610 = vset.pattern.permute.xlu0 0
  %611 = vperm.xlu0 %610, %v601
  %v612 = vpop.permute.xlu0 %611
  %615 = vset.pattern.permute.xlu0 0
  %616 = vperm.xlu0 %615, %v602
  %v617 = vpop.permute.xlu0 %616
  %620 = vset.pattern.permute.xlu0 0
  %621 = vperm.xlu0 %620, %v603
  %v622 = vpop.permute.xlu0 %621
  %vm624 = vcmask 293888
  %v626 = vsel %vm624, %v576, 0
  %v629 = vsel %vm624, %v577, 0
  %v632 = vsel %vm624, %v578, 0
  %v635 = vsel %vm624, %v579, 0
  %vm637 = vcmask 1043456
  %v639 = vsel %vm637, %v596, 0
  %v642 = vsel %vm637, %v597, 0
  %v645 = vsel %vm637, %v598, 0
  %v648 = vsel %vm637, %v599, 0
  %650 = vmatprep.subr.mxu0 %v581
  %651 = vmatpush1.msra.mxu0 %v580
  %652 = vmatprep.subr.mxu0 %v585
  %653 = vmatpush1.msra.mxu0 %v584
  %654 = vmatprep.subr.mxu0 %v589
  %655 = vmatpush1.msra.mxu0 %v588
  %656 = vmatprep.subr.mxu0 %v593
  %657 = vmatpush1.msra.mxu0 %v592
  %658 = vmatprep.subr.mxu0 %v642
  %659 = vmatpush1.msra.mxu0 %v639
  %660 = vmatprep.subr.mxu0 0.0
  %661 = vmatpush1.msra.mxu0 0.0
  %662 = vmatprep.subr.mxu0 0.0
  %663 = vmatpush1.msra.mxu0 0.0
  %664 = vmatprep.subr.mxu0 0.0
  %665 = vmatpush1.msra.mxu0 0.0
  %666 = vmatprep.subr.mxu0 0.0
  %667 = vmatpush1.msra.mxu0 0.0
  %668 = vmatprep.subr.mxu0 0.0
  %669 = vmatpush1.msra.mxu0 0.0
  %670 = vmatprep.subr.mxu0 0.0
  %671 = vmatpush1.msra.mxu0 0.0
  %672 = vmatprep.subr.mxu0 0.0
  %673 = vmatpush1.msra.mxu0 0.0
  %674 = vmatprep.subr.mxu0 0.0
  %675 = vmatpush1.msra.mxu0 0.0
  %676 = vmatprep.subr.mxu0 0.0
  %677 = vmatpush1.msra.mxu0 0.0
  %678 = vmatprep.subr.mxu0 0.0
  %679 = vmatpush1.msra.mxu0 0.0
  %680 = vmatprep.subr.mxu0 0.0
  %681 = vmatpush1.msra.mxu0 0.0
  %682 = vmatprep.subr.mxu0 0.0
  %683 = vmatpush1.msra.mxu0 0.0
  %684 = vmatprep.subr.mxu0 0.0
  %685 = vmatpush1.msra.mxu0 0.0
  %686 = vmatprep.subr.mxu0 0.0
  %687 = vmatpush1.msra.mxu0 0.0
  %688 = vmatprep.subr.mxu0 0.0
  %689 = vmatpush1.msra.mxu0 0.0
  %690 = vmatprep.subr.mxu0 0.0
  %691 = vmatpush1.msra.mxu0 0.0
  %692 = vmatprep.subr.mxu0 0.0
  %693 = vmatpush1.msra.mxu0 0.0
  %694 = vmatprep.subr.mxu0 0.0
  %695 = vmatpush1.msra.mxu0 0.0
  %696 = vmatprep.subr.mxu0 0.0
  %697 = vmatpush1.msra.mxu0 0.0
  %698 = vmatprep.subr.mxu0 0.0
  %699 = vmatpush1.msra.mxu0 0.0
  %700 = vmatprep.subr.mxu0 0.0
  %701 = vmatpush1.msra.mxu0 0.0
  %702 = vmatprep.subr.mxu0 0.0
  %703 = vmatpush1.msra.mxu0 0.0
  %704 = vmatprep.subr.mxu0 0.0
  %705 = vmatpush1.msra.mxu0 0.0
  %706 = vmatprep.subr.mxu0 0.0
  %707 = vmatpush1.msra.mxu0 0.0
  %708 = vmatprep.subr.mxu0 0.0
  %709 = vmatpush1.msra.mxu0 0.0
  %710 = vmatprep.subr.mxu0 0.0
  %711 = vmatpush1.msra.mxu0 0.0
  %712 = vmatprep.subr.mxu0 0.0
  %713 = vmatpush1.msra.mxu0 0.0
  %714 = vmatprep.mubr.f32.mxu0 0.0
  %715 = vmatmul.mubr.f32.gmra.mrb[0].mxu0 %v626
  %v716 = vpop.f32.mrb[0].mxu0
  %v717 = vadd.f32 %v607, %v716
  %v718 = vpop.f32.mrb[0].mxu0
  %v719 = vadd.f32 %v607, %v718
  %720 = vmatprep.mubr.f32.mxu0 0.0
  %721 = vmatmul.mubr.f32.gmra.mrb[0].mxu0 %v629
  %v722 = vpop.f32.mrb[0].mxu0
  %v723 = vadd.f32 %v612, %v722
  %v724 = vpop.f32.mrb[0].mxu0
  %v725 = vadd.f32 %v612, %v724
  %726 = vmatprep.mubr.f32.mxu0 0.0
  %727 = vmatmul.mubr.f32.gmra.mrb[0].mxu0 %v632
  %v728 = vpop.f32.mrb[0].mxu0
  %v729 = vadd.f32 %v617, %v728
  %v730 = vpop.f32.mrb[0].mxu0
  %v731 = vadd.f32 %v617, %v730
  %732 = vmatprep.mubr.f32.mxu0 0.0
  %733 = vmatmul.mubr.f32.gmra.mrb[0].mxu0 %v635
  %v734 = vpop.f32.mrb[0].mxu0
  %v735 = vadd.f32 %v622, %v734
  %v736 = vpop.f32.mrb[0].mxu0
  %v737 = vadd.f32 %v622, %v736
  %738 = vdwg.mxu0
  %739 = vmatprep.subr.mxu0 %v583
  %740 = vmatpush1.msra.mxu0 %v582
  %741 = vmatprep.subr.mxu0 %v587
  %742 = vmatpush1.msra.mxu0 %v586
  %743 = vmatprep.subr.mxu0 %v591
  %744 = vmatpush1.msra.mxu0 %v590
  %745 = vmatprep.subr.mxu0 %v595
  %746 = vmatpush1.msra.mxu0 %v594
  %747 = vmatprep.subr.mxu0 %v648
  %748 = vmatpush1.msra.mxu0 %v645
  %749 = vmatprep.subr.mxu0 0.0
  %750 = vmatpush1.msra.mxu0 0.0
  %751 = vmatprep.subr.mxu0 0.0
  %752 = vmatpush1.msra.mxu0 0.0
  %753 = vmatprep.subr.mxu0 0.0
  %754 = vmatpush1.msra.mxu0 0.0
  %755 = vmatprep.subr.mxu0 0.0
  %756 = vmatpush1.msra.mxu0 0.0
  %757 = vmatprep.subr.mxu0 0.0
  %758 = vmatpush1.msra.mxu0 0.0
  %759 = vmatprep.subr.mxu0 0.0
  %760 = vmatpush1.msra.mxu0 0.0
  %761 = vmatprep.subr.mxu0 0.0
  %762 = vmatpush1.msra.mxu0 0.0
  %763 = vmatprep.subr.mxu0 0.0
  %764 = vmatpush1.msra.mxu0 0.0
  %765 = vmatprep.subr.mxu0 0.0
  %766 = vmatpush1.msra.mxu0 0.0
  %767 = vmatprep.subr.mxu0 0.0
  %768 = vmatpush1.msra.mxu0 0.0
  %769 = vmatprep.subr.mxu0 0.0
  %770 = vmatpush1.msra.mxu0 0.0
  %771 = vmatprep.subr.mxu0 0.0
  %772 = vmatpush1.msra.mxu0 0.0
  %773 = vmatprep.subr.mxu0 0.0
  %774 = vmatpush1.msra.mxu0 0.0
  %775 = vmatprep.subr.mxu0 0.0
  %776 = vmatpush1.msra.mxu0 0.0
  %777 = vmatprep.subr.mxu0 0.0
  %778 = vmatpush1.msra.mxu0 0.0
  %779 = vmatprep.subr.mxu0 0.0
  %780 = vmatpush1.msra.mxu0 0.0
  %781 = vmatprep.subr.mxu0 0.0
  %782 = vmatpush1.msra.mxu0 0.0
  %783 = vmatprep.subr.mxu0 0.0
  %784 = vmatpush1.msra.mxu0 0.0
  %785 = vmatprep.subr.mxu0 0.0
  %786 = vmatpush1.msra.mxu0 0.0
  %787 = vmatprep.subr.mxu0 0.0
  %788 = vmatpush1.msra.mxu0 0.0
  %789 = vmatprep.subr.mxu0 0.0
  %790 = vmatpush1.msra.mxu0 0.0
  %791 = vmatprep.subr.mxu0 0.0
  %792 = vmatpush1.msra.mxu0 0.0
  %793 = vmatprep.subr.mxu0 0.0
  %794 = vmatpush1.msra.mxu0 0.0
  %795 = vmatprep.subr.mxu0 0.0
  %796 = vmatpush1.msra.mxu0 0.0
  %797 = vmatprep.subr.mxu0 0.0
  %798 = vmatpush1.msra.mxu0 0.0
  %799 = vmatprep.subr.mxu0 0.0
  %800 = vmatpush1.msra.mxu0 0.0
  %801 = vmatprep.subr.mxu0 0.0
  %802 = vmatpush1.msra.mxu0 0.0
  %803 = vmatprep.mubr.f32.mxu0 0.0
  %804 = vmatmul.mubr.f32.gmra.mrb[0].mxu0 %v626
  %v805 = vpop.f32.mrb[0].mxu0
  %v806 = vadd.f32 %v607, %v805
  %v807 = vpop.f32.mrb[0].mxu0
  %v808 = vadd.f32 %v607, %v807
  %809 = vmatprep.mubr.f32.mxu0 0.0
  %810 = vmatmul.mubr.f32.gmra.mrb[0].mxu0 %v629
  %v811 = vpop.f32.mrb[0].mxu0
  %v812 = vadd.f32 %v612, %v811
  %v813 = vpop.f32.mrb[0].mxu0
  %v814 = vadd.f32 %v612, %v813
  %815 = vmatprep.mubr.f32.mxu0 0.0
  %816 = vmatmul.mubr.f32.gmra.mrb[0].mxu0 %v632
  %v817 = vpop.f32.mrb[0].mxu0
  %v818 = vadd.f32 %v617, %v817
  %v819 = vpop.f32.mrb[0].mxu0
  %v820 = vadd.f32 %v617, %v819
  %821 = vmatprep.mubr.f32.mxu0 0.0
  %822 = vmatmul.mubr.f32.gmra.mrb[0].mxu0 %v635
  %v823 = vpop.f32.mrb[0].mxu0
  %v824 = vadd.f32 %v622, %v823
  %v825 = vpop.f32.mrb[0].mxu0
  %v826 = vadd.f32 %v622, %v825
  %827 = vdwg.mxu0
  %828 = vst [vmem:[%s4] sm:$0xff] %v717
  %829 = vst [vmem:[%s4 + $0x8] sm:$0xff] %v719
  %830 = vst [vmem:[%s4 + $0x10] sm:$0xff] %v806
  %831 = vst [vmem:[%s4 + $0x18] sm:$0xff] %v808
  %832 = vst [vmem:[%s4 + $0x20] sm:$0xff] %v723
  %833 = vst [vmem:[%s4 + $0x28] sm:$0xff] %v725
  %834 = vst [vmem:[%s4 + $0x30] sm:$0xff] %v812
  %835 = vst [vmem:[%s4 + $0x38] sm:$0xff] %v814
  %836 = vst [vmem:[%s4 + $0x40] sm:$0xff] %v729
  %837 = vst [vmem:[%s4 + $0x48] sm:$0xff] %v731
  %838 = vst [vmem:[%s4 + $0x50] sm:$0xff] %v818
  %839 = vst [vmem:[%s4 + $0x58] sm:$0xff] %v820
  %840 = vst [vmem:[%s4 + $0x60] sm:$0xff] %v735
  %841 = vst [vmem:[%s4 + $0x68] sm:$0xff] %v737
  %842 = vst [vmem:[%s4 + $0x70] sm:$0xff] %v824
  %843 = vst [vmem:[%s4 + $0x78] sm:$0xff] %v826
  // Predicated region
  $region18: #{upsample_conv.1} parent=0 // pred_check
    _
  $region19: #{upsample_conv.1} parent=0 // pred_check_branch
    %845 = sbr.rel (0) target = $region21
  $region20: #{upsample_conv.1} parent=0 // pred_region
    _
  $region21: #{upsample_conv.1} parent=0 // pred_fallthru
    _
  // Predicated region
  $region22: #{upsample_conv.1} parent=0 // pred_check
    _
  $region23: #{upsample_conv.1} parent=0 // pred_check_branch
    %847 = sbr.rel (0) target = $region25
  $region24: #{upsample_conv.1} parent=0 // pred_region
    _
  $region25: #{upsample_conv.1} parent=0 // pred_fallthru
    _

</llo_original>
